<compile_context>
chip_gen: v7x
topology: tpu7x:2x2x1
jax: 0.10.0
libtpu: 0.0.40
codegen_flags: <defaults>
</compile_context>

<pallas_src>
import jax
import jax.numpy as jnp
from jax.experimental import pallas as pl
from jax.experimental.pallas import tpu as pltpu

HIDDEN = 100          # logical hidden width (PyTorch module)
PAD = 128             # lane-padded width used inside the kernel
NUM_LAYERS = 7
SUBLANE = 8


def _round_up(x, m):
    return (x + m - 1) // m * m


def mlp_kernel(x_ref, w_ref, b_ref, o_ref):
    """Fused 7-layer MLP forward on one batch tile (all operands in VMEM).

    x_ref: (TILE_B, in_dim_r)  f32 input activations (true feature width,
                               rounded to a multiple of 8 only if needed)
    w_ref: (7, 128, 128)       bf16 stacked, pre-transposed, zero-padded weights
    b_ref: (7, 1, 128)         f32 stacked, zero-padded biases
    o_ref: (TILE_B, 128)       f32 lane-padded output
    """
    in_dim_r = x_ref.shape[-1]

    # Layer 1: static slice of the first weight block down to the true input
    # width (a free VMEM-ref view; in_dim_r is a multiple of 8).
    h = x_ref[...].astype(jnp.bfloat16)
    y = jnp.dot(h, w_ref[0, :in_dim_r, :], preferred_element_type=jnp.float32)
    h = jnp.maximum(y + b_ref[0], 0.0).astype(jnp.bfloat16)

    # Layers 2..6: bf16 matmul, f32 accumulate + bias, ReLU, back to bf16.
    # Statically unrolled: small live set (7 bf16 weight tiles), good LLO
    # visibility.  If a bundle dump ever shows spills, switch to lax.fori_loop
    # with a dynamic w_ref[i] index to bound live ranges.
    for i in range(1, NUM_LAYERS - 1):
        y = jnp.dot(h, w_ref[i], preferred_element_type=jnp.float32) + b_ref[i]
        h = jnp.maximum(y, 0.0).astype(jnp.bfloat16)

    # Final layer: no ReLU; lane-dense f32 store (padded lanes are exact 0).
    o_ref[...] = (
        jnp.dot(h, w_ref[NUM_LAYERS - 1], preferred_element_type=jnp.float32)
        + b_ref[NUM_LAYERS - 1]
    )


@jax.jit
def network_forward(x, w_stack, b_stack):
    """x: (batch, in_dim) f32; w_stack: (7,128,128) bf16; b_stack: (7,1,128) f32.

    Returns the lane-padded (batch, 128) output.  The consumer slices
    [:, :out_dim] (kept out of the kernel so stores stay lane-dense, and out
    of this launch-bound wrapper).
    """
    batch, in_dim = x.shape
    assert in_dim <= PAD  # TODO(synk): tile the first layer's K dim if input > 128

    # Pad the feature dim only if it is not sublane-aligned (no-op for the
    # demo's in_dim=32 -> no extra XLA dispatch / HBM round-trip).
    in_dim_r = _round_up(in_dim, SUBLANE)
    if in_dim_r != in_dim:
        x = jnp.pad(x, ((0, 0), (0, in_dim_r - in_dim)))

    # Batch tiling: single full-batch tile when small; 256-row tiles (MXU
    # height on v6e/v7x; multiple of 128 for v5e) when large, so the
    # "parallel" grid axis can use both v7x TensorCores.
    tile_b = batch if batch <= 256 else 256
    batch_r = _round_up(batch, tile_b)
    if batch_r != batch:
        x = jnp.pad(x, ((0, batch_r - batch), (0, 0)))
    grid = (batch_r // tile_b,)

    flops = 2 * batch_r * NUM_LAYERS * PAD * PAD
    bytes_accessed = (
        x.size * 4 + w_stack.size * 2 + b_stack.size * 4 + batch_r * PAD * 4
    )

    out = pl.pallas_call(
        mlp_kernel,
        out_shape=jax.ShapeDtypeStruct((batch_r, PAD), jnp.float32),
        grid_spec=pltpu.PrefetchScalarGridSpec(
            num_scalar_prefetch=0,
            grid=grid,
            in_specs=[
                pl.BlockSpec((tile_b, in_dim_r), lambda i: (i, 0)),
                # Constant index_map -> weights/biases stay VMEM-resident
                # across all batch tiles (a single HBM->VMEM DMA).
                pl.BlockSpec((NUM_LAYERS, PAD, PAD), lambda i: (0, 0, 0)),
                pl.BlockSpec((NUM_LAYERS, 1, PAD), lambda i: (0, 0, 0)),
            ],
            out_specs=pl.BlockSpec((tile_b, PAD), lambda i: (i, 0)),
        ),
        compiler_params=pltpu.CompilerParams(
            dimension_semantics=("parallel",),
        ),
        cost_estimate=pl.CostEstimate(
            flops=flops, transcendentals=0, bytes_accessed=bytes_accessed
        ),
    )(x, w_stack, b_stack)

    return out[:batch] if batch_r != batch else out


def make_params(key, input_dim, output_dim):
    """Builds (a) unpadded f32 per-layer params for the reference and
    (b) lane-padded stacked params for the kernel (weights bf16, biases f32).

    Init mimics PyTorch nn.Linear default: U(-1/sqrt(in), 1/sqrt(in)).
    Weights are kept transposed as (in, out) so the kernel computes x @ W.
    """
    dims = [input_dim] + [HIDDEN] * 6 + [output_dim]
    raw = []
    w_stack = jnp.zeros((NUM_LAYERS, PAD, PAD), jnp.float32)
    b_stack = jnp.zeros((NUM_LAYERS, 1, PAD), jnp.float32)
    for i in range(NUM_LAYERS):
        key, sub = jax.random.split(key)
        kw, kb = jax.random.split(sub)
        in_d, out_d = dims[i], dims[i + 1]
        bound = 1.0 / (in_d ** 0.5)
        w_t = jax.random.uniform(kw, (in_d, out_d), jnp.float32, -bound, bound)
        b = jax.random.uniform(kb, (out_d,), jnp.float32, -bound, bound)
        raw.append((w_t, b))
        w_stack = w_stack.at[i, :in_d, :out_d].set(w_t)
        b_stack = b_stack.at[i, 0, :out_d].set(b)
    return raw, w_stack.astype(jnp.bfloat16), b_stack


def reference_forward_f32(x, raw_params):
    """Plain-JAX f32 reference replicating the PyTorch forward pass."""
    h = x
    for i, (w, b) in enumerate(raw_params):
        h = h @ w + b
        if i < len(raw_params) - 1:
            h = jnp.maximum(h, 0.0)
    return h


def reference_forward_matched(x, raw_params):
    """Plain-JAX reference with the kernel's precision policy:
    bf16 weights & activations, f32 accumulation / bias / ReLU."""
    h = x.astype(jnp.bfloat16)
    for i, (w, b) in enumerate(raw_params):
        y = jnp.dot(h, w.astype(jnp.bfloat16),
                    preferred_element_type=jnp.float32) + b
        if i < len(raw_params) - 1:
            h = jnp.maximum(y, 0.0).astype(jnp.bfloat16)
        else:
            h = y
    return h


if __name__ == "__main__":
    key = jax.random.PRNGKey(0)
    k_params, k_x = jax.random.split(key)

    batch, input_dim, output_dim = 8, 32, 10
    raw_params, w_stack, b_stack = make_params(k_params, input_dim, output_dim)
    x = jax.random.normal(k_x, (batch, input_dim), jnp.float32)

    out_pad = jax.block_until_ready(network_forward(x, w_stack, b_stack))
    assert out_pad.shape == (batch, PAD)

    # Slice deferred to the consumer (kept out of kernel & wrapper).
    out = out_pad[:, :output_dim]

    # Exact-policy check: same bf16-weight / f32-accumulate math in plain JAX.
    ref_matched = reference_forward_matched(x, raw_params)
    assert jnp.allclose(out, ref_matched, atol=2e-3, rtol=2e-3), \
        "mismatch vs matched-precision reference"

    # PyTorch-semantics f32 reference: loose tolerance due to bf16 weights.
    ref_f32 = reference_forward_f32(x, raw_params)
    assert jnp.allclose(out, ref_f32, atol=5e-2, rtol=5e-2), \
        "mismatch vs f32 reference"

    # Padded output lanes are exact zeros (zero weight columns, zero biases).
    assert jnp.all(out_pad[:, output_dim:] == 0.0)

    print("KERNEL_OK")
</pallas_src>

<mosaic_0001>
module attributes {stable_mosaic.version = 11 : i64} {
  func.func @mlp_kernel(%arg0: i32, %arg1: memref<8x32xf32, #tpu.memory_space<vmem>>, %arg2: memref<7x128x128xbf16, #tpu.memory_space<vmem>>, %arg3: memref<7x1x128xf32, #tpu.memory_space<vmem>>, %arg4: memref<8x128xf32, #tpu.memory_space<vmem>>) attributes {dimension_semantics = [#tpu.dimension_semantics<parallel>], iteration_bounds = array<i64: 1>, scalar_prefetch = 0 : i64, scratch_operands = 0 : i64, tpu.core_type = #tpu.core_type<tc>, window_params = [{transform_indices = @transform_0, window_bounds = array<i64: 8, 32>}, {pipeline_mode = #tpu.pipeline_mode<synchronous>, transform_indices = @transform_1, window_bounds = array<i64: 7, 128, 128>}, {pipeline_mode = #tpu.pipeline_mode<synchronous>, transform_indices = @transform_2, window_bounds = array<i64: 7, 1, 128>}, {transform_indices = @transform_3, window_bounds = array<i64: 8, 128>}]} {
    %c0 = arith.constant 0 : index
    %c0_0 = arith.constant 0 : index
    %0 = vector.load %arg1[%c0, %c0_0] : memref<8x32xf32, #tpu.memory_space<vmem>>, vector<8x32xf32>
    %1 = arith.truncf %0 : vector<8x32xf32> to vector<8x32xbf16>
    %c0_1 = arith.constant 0 : index
    %c0_2 = arith.constant 0 : index
    %c0_3 = arith.constant 0 : index
    %2 = vector.load %arg2[%c0_1, %c0_2, %c0_3] : memref<7x128x128xbf16, #tpu.memory_space<vmem>>, vector<1x32x128xbf16>
    %3 = vector.shape_cast %2 : vector<1x32x128xbf16> to vector<32x128xbf16>
    %cst = arith.constant dense<0.000000e+00> : vector<8x128xf32>
    %4 = tpu.matmul %1, %3, %cst {dimension_numbers = #tpu.dot_dimension_numbers<[1], [0], [0], [1], [0, 0, 1, 1], [], []>} : vector<8x32xbf16>, vector<32x128xbf16>, vector<8x128xf32> -> vector<8x128xf32>
    %c0_4 = arith.constant 0 : index
    %c0_5 = arith.constant 0 : index
    %c0_6 = arith.constant 0 : index
    %5 = vector.load %arg3[%c0_4, %c0_5, %c0_6] : memref<7x1x128xf32, #tpu.memory_space<vmem>>, vector<1x1x128xf32>
    %6 = vector.shape_cast %5 : vector<1x1x128xf32> to vector<1x128xf32>
    %7 = vector.broadcast %6 : vector<1x128xf32> to vector<8x128xf32>
    %8 = arith.addf %4, %7 : vector<8x128xf32>
    %cst_7 = arith.constant 0.000000e+00 : f32
    %9 = vector.broadcast %cst_7 : f32 to vector<8x128xf32>
    %10 = arith.maximumf %8, %9 : vector<8x128xf32>
    %11 = arith.truncf %10 : vector<8x128xf32> to vector<8x128xbf16>
    %c1 = arith.constant 1 : index
    %c0_8 = arith.constant 0 : index
    %c0_9 = arith.constant 0 : index
    %12 = vector.load %arg2[%c1, %c0_8, %c0_9] : memref<7x128x128xbf16, #tpu.memory_space<vmem>>, vector<1x128x128xbf16>
    %13 = vector.shape_cast %12 : vector<1x128x128xbf16> to vector<128x128xbf16>
    %cst_10 = arith.constant dense<0.000000e+00> : vector<8x128xf32>
    %14 = tpu.matmul %11, %13, %cst_10 {dimension_numbers = #tpu.dot_dimension_numbers<[1], [0], [0], [1], [0, 0, 1, 1], [], []>} : vector<8x128xbf16>, vector<128x128xbf16>, vector<8x128xf32> -> vector<8x128xf32>
    %c1_11 = arith.constant 1 : index
    %c0_12 = arith.constant 0 : index
    %c0_13 = arith.constant 0 : index
    %15 = vector.load %arg3[%c1_11, %c0_12, %c0_13] : memref<7x1x128xf32, #tpu.memory_space<vmem>>, vector<1x1x128xf32>
    %16 = vector.shape_cast %15 : vector<1x1x128xf32> to vector<1x128xf32>
    %17 = vector.broadcast %16 : vector<1x128xf32> to vector<8x128xf32>
    %18 = arith.addf %14, %17 : vector<8x128xf32>
    %cst_14 = arith.constant 0.000000e+00 : f32
    %19 = vector.broadcast %cst_14 : f32 to vector<8x128xf32>
    %20 = arith.maximumf %18, %19 : vector<8x128xf32>
    %21 = arith.truncf %20 : vector<8x128xf32> to vector<8x128xbf16>
    %c2 = arith.constant 2 : index
    %c0_15 = arith.constant 0 : index
    %c0_16 = arith.constant 0 : index
    %22 = vector.load %arg2[%c2, %c0_15, %c0_16] : memref<7x128x128xbf16, #tpu.memory_space<vmem>>, vector<1x128x128xbf16>
    %23 = vector.shape_cast %22 : vector<1x128x128xbf16> to vector<128x128xbf16>
    %cst_17 = arith.constant dense<0.000000e+00> : vector<8x128xf32>
    %24 = tpu.matmul %21, %23, %cst_17 {dimension_numbers = #tpu.dot_dimension_numbers<[1], [0], [0], [1], [0, 0, 1, 1], [], []>} : vector<8x128xbf16>, vector<128x128xbf16>, vector<8x128xf32> -> vector<8x128xf32>
    %c2_18 = arith.constant 2 : index
    %c0_19 = arith.constant 0 : index
    %c0_20 = arith.constant 0 : index
    %25 = vector.load %arg3[%c2_18, %c0_19, %c0_20] : memref<7x1x128xf32, #tpu.memory_space<vmem>>, vector<1x1x128xf32>
    %26 = vector.shape_cast %25 : vector<1x1x128xf32> to vector<1x128xf32>
    %27 = vector.broadcast %26 : vector<1x128xf32> to vector<8x128xf32>
    %28 = arith.addf %24, %27 : vector<8x128xf32>
    %cst_21 = arith.constant 0.000000e+00 : f32
    %29 = vector.broadcast %cst_21 : f32 to vector<8x128xf32>
    %30 = arith.maximumf %28, %29 : vector<8x128xf32>
    %31 = arith.truncf %30 : vector<8x128xf32> to vector<8x128xbf16>
    %c3 = arith.constant 3 : index
    %c0_22 = arith.constant 0 : index
    %c0_23 = arith.constant 0 : index
    %32 = vector.load %arg2[%c3, %c0_22, %c0_23] : memref<7x128x128xbf16, #tpu.memory_space<vmem>>, vector<1x128x128xbf16>
    %33 = vector.shape_cast %32 : vector<1x128x128xbf16> to vector<128x128xbf16>
    %cst_24 = arith.constant dense<0.000000e+00> : vector<8x128xf32>
    %34 = tpu.matmul %31, %33, %cst_24 {dimension_numbers = #tpu.dot_dimension_numbers<[1], [0], [0], [1], [0, 0, 1, 1], [], []>} : vector<8x128xbf16>, vector<128x128xbf16>, vector<8x128xf32> -> vector<8x128xf32>
    %c3_25 = arith.constant 3 : index
    %c0_26 = arith.constant 0 : index
    %c0_27 = arith.constant 0 : index
    %35 = vector.load %arg3[%c3_25, %c0_26, %c0_27] : memref<7x1x128xf32, #tpu.memory_space<vmem>>, vector<1x1x128xf32>
    %36 = vector.shape_cast %35 : vector<1x1x128xf32> to vector<1x128xf32>
    %37 = vector.broadcast %36 : vector<1x128xf32> to vector<8x128xf32>
    %38 = arith.addf %34, %37 : vector<8x128xf32>
    %cst_28 = arith.constant 0.000000e+00 : f32
    %39 = vector.broadcast %cst_28 : f32 to vector<8x128xf32>
    %40 = arith.maximumf %38, %39 : vector<8x128xf32>
    %41 = arith.truncf %40 : vector<8x128xf32> to vector<8x128xbf16>
    %c4 = arith.constant 4 : index
    %c0_29 = arith.constant 0 : index
    %c0_30 = arith.constant 0 : index
    %42 = vector.load %arg2[%c4, %c0_29, %c0_30] : memref<7x128x128xbf16, #tpu.memory_space<vmem>>, vector<1x128x128xbf16>
    %43 = vector.shape_cast %42 : vector<1x128x128xbf16> to vector<128x128xbf16>
    %cst_31 = arith.constant dense<0.000000e+00> : vector<8x128xf32>
    %44 = tpu.matmul %41, %43, %cst_31 {dimension_numbers = #tpu.dot_dimension_numbers<[1], [0], [0], [1], [0, 0, 1, 1], [], []>} : vector<8x128xbf16>, vector<128x128xbf16>, vector<8x128xf32> -> vector<8x128xf32>
    %c4_32 = arith.constant 4 : index
    %c0_33 = arith.constant 0 : index
    %c0_34 = arith.constant 0 : index
    %45 = vector.load %arg3[%c4_32, %c0_33, %c0_34] : memref<7x1x128xf32, #tpu.memory_space<vmem>>, vector<1x1x128xf32>
    %46 = vector.shape_cast %45 : vector<1x1x128xf32> to vector<1x128xf32>
    %47 = vector.broadcast %46 : vector<1x128xf32> to vector<8x128xf32>
    %48 = arith.addf %44, %47 : vector<8x128xf32>
    %cst_35 = arith.constant 0.000000e+00 : f32
    %49 = vector.broadcast %cst_35 : f32 to vector<8x128xf32>
    %50 = arith.maximumf %48, %49 : vector<8x128xf32>
    %51 = arith.truncf %50 : vector<8x128xf32> to vector<8x128xbf16>
    %c5 = arith.constant 5 : index
    %c0_36 = arith.constant 0 : index
    %c0_37 = arith.constant 0 : index
    %52 = vector.load %arg2[%c5, %c0_36, %c0_37] : memref<7x128x128xbf16, #tpu.memory_space<vmem>>, vector<1x128x128xbf16>
    %53 = vector.shape_cast %52 : vector<1x128x128xbf16> to vector<128x128xbf16>
    %cst_38 = arith.constant dense<0.000000e+00> : vector<8x128xf32>
    %54 = tpu.matmul %51, %53, %cst_38 {dimension_numbers = #tpu.dot_dimension_numbers<[1], [0], [0], [1], [0, 0, 1, 1], [], []>} : vector<8x128xbf16>, vector<128x128xbf16>, vector<8x128xf32> -> vector<8x128xf32>
    %c5_39 = arith.constant 5 : index
    %c0_40 = arith.constant 0 : index
    %c0_41 = arith.constant 0 : index
    %55 = vector.load %arg3[%c5_39, %c0_40, %c0_41] : memref<7x1x128xf32, #tpu.memory_space<vmem>>, vector<1x1x128xf32>
    %56 = vector.shape_cast %55 : vector<1x1x128xf32> to vector<1x128xf32>
    %57 = vector.broadcast %56 : vector<1x128xf32> to vector<8x128xf32>
    %58 = arith.addf %54, %57 : vector<8x128xf32>
    %cst_42 = arith.constant 0.000000e+00 : f32
    %59 = vector.broadcast %cst_42 : f32 to vector<8x128xf32>
    %60 = arith.maximumf %58, %59 : vector<8x128xf32>
    %61 = arith.truncf %60 : vector<8x128xf32> to vector<8x128xbf16>
    %c6 = arith.constant 6 : index
    %c0_43 = arith.constant 0 : index
    %c0_44 = arith.constant 0 : index
    %62 = vector.load %arg2[%c6, %c0_43, %c0_44] : memref<7x128x128xbf16, #tpu.memory_space<vmem>>, vector<1x128x128xbf16>
    %63 = vector.shape_cast %62 : vector<1x128x128xbf16> to vector<128x128xbf16>
    %cst_45 = arith.constant dense<0.000000e+00> : vector<8x128xf32>
    %64 = tpu.matmul %61, %63, %cst_45 {dimension_numbers = #tpu.dot_dimension_numbers<[1], [0], [0], [1], [0, 0, 1, 1], [], []>} : vector<8x128xbf16>, vector<128x128xbf16>, vector<8x128xf32> -> vector<8x128xf32>
    %c6_46 = arith.constant 6 : index
    %c0_47 = arith.constant 0 : index
    %c0_48 = arith.constant 0 : index
    %65 = vector.load %arg3[%c6_46, %c0_47, %c0_48] : memref<7x1x128xf32, #tpu.memory_space<vmem>>, vector<1x1x128xf32>
    %66 = vector.shape_cast %65 : vector<1x1x128xf32> to vector<1x128xf32>
    %67 = vector.broadcast %66 : vector<1x128xf32> to vector<8x128xf32>
    %68 = arith.addf %64, %67 : vector<8x128xf32>
    %c0_49 = arith.constant 0 : index
    %c0_50 = arith.constant 0 : index
    %69 = vector.load %arg4[%c0_49, %c0_50] : memref<8x128xf32, #tpu.memory_space<vmem>>, vector<8x128xf32>
    tpu.vector_store %arg4[%c0_49, %c0_50], %68 {strides = array<i32>} : memref<8x128xf32, #tpu.memory_space<vmem>>, vector<8x128xf32>,
    return
  }
  func.func @transform_0(%arg0: i32) -> (i32, i32) {
    %c0_i32 = arith.constant 0 : i32
    %c0_i32_0 = arith.constant 0 : i32
    return %arg0, %c0_i32 : i32, i32
  }
  func.func @transform_1(%arg0: i32) -> (i32, i32, i32) {
    %c0_i32 = arith.constant 0 : i32
    %c0_i32_0 = arith.constant 0 : i32
    %c0_i32_1 = arith.constant 0 : i32
    %c0_i32_2 = arith.constant 0 : i32
    return %c0_i32, %c0_i32_0, %c0_i32_1 : i32, i32, i32
  }
  func.func @transform_2(%arg0: i32) -> (i32, i32, i32) {
    %c0_i32 = arith.constant 0 : i32
    %c0_i32_0 = arith.constant 0 : i32
    %c0_i32_1 = arith.constant 0 : i32
    %c0_i32_2 = arith.constant 0 : i32
    return %c0_i32, %c0_i32_0, %c0_i32_1 : i32, i32, i32
  }
  func.func @transform_3(%arg0: i32) -> (i32, i32) {
    %c0_i32 = arith.constant 0 : i32
    %c0_i32_0 = arith.constant 0 : i32
    return %arg0, %c0_i32 : i32, i32
  }
}

</mosaic_0001>

<llo_original>
// kernel: network_forward.1
$region0: #{network_forward.1}
  #allocation0 [shape = 'u32[]', space=smem, size = 0x4, offset = 0x4, fixed_abs, tag = 'smem constant byte address 0x4 - core index']
  #allocation1 [shape = 'u32[144,128]{1,0:T(1,128)}', space=vmem, size = 0x12000, scoped, tag = 'internal scratch']
  %s0 = inlined_call_operand.hbm [shape: f32[8,32], index: 0, kind: input, shape index: {}]
  %s1 = inlined_call_operand.hbm [shape: bf16[7,128,128], index: 1, kind: input, shape index: {}]
  %s2 = inlined_call_operand.vmem [shape: f32[7,1,128], index: 2, kind: input, shape index: {}]
  %s3 = inlined_call_operand.hbm [shape: f32[8,128], index: 3, kind: output, shape index: {}]
  %s4 = sld [smem:[#allocation0]]
  $region30: #{network_forward.1} parent=0
    _
  %s6 = ssub.s32 1, %s4
  %s7 = scalar_select 0, %s6, %s4
  $region1: #{network_forward.1} parent=0
    #allocation2 [shape = 'u8[4096]{0}', space=vmem, size = 0x1000, scoped, tag = 'input window, operand 0, single buffered']
    #allocation3 [shape = 's32[1]{0}', space=sflag, size = 0x4, scoped, tag = 'scoped memory for network_forward.1']
    #allocation4 [shape = 's32[1]{0}', space=sflag, size = 0x4, scoped, tag = 'scoped memory for network_forward.1']
    #allocation5 [shape = 'u8[229376]{0}', space=vmem, size = 0x38000, scoped, tag = 'input window, operand 1, single buffered']
    #allocation6 [shape = 's32[1]{0}', space=sflag, size = 0x4, scoped, tag = 'scoped memory for network_forward.1']
    #allocation7 [shape = 'u8[4096]{0}', space=vmem, size = 0x1000, scoped, tag = 'output window, operand 0, single buffered']
    %8 = vsyncpa [#allocation3], 0
    %9 = vsyncpa [#allocation6], 0
    %10 = vsyncpa [#allocation4], 0
    // Predicated region
    $region2: #{network_forward.1} parent=1 // pred_check
      _
    $region3: #{network_forward.1} parent=1 // pred_check_branch
      %12 = sbr.rel (0) target = $region5
    $region4: #{network_forward.1} parent=1 // pred_region
      %s14 = ssub.s32 128, 128
      %15 = vsyncadd [#allocation3], %s14
      %s17 = sshll.u32 [#allocation2], 4
      %s18 = int_to_ptr.vmem [resolvable:$true] %s17
      %20 = dma.hbm_to_vmem [thread:$0]  %s0, 128, %s18, [#allocation3]
    $region5: #{network_forward.1} parent=1 // pred_fallthru
      _
    // Predicated region
    $region6: #{network_forward.1} parent=1 // pred_check
      _
    $region7: #{network_forward.1} parent=1 // pred_check_branch
      %22 = sbr.rel (0) target = $region9
    $region8: #{network_forward.1} parent=1 // pred_region
      %s24 = ssub.s32 7168, 7168
      %25 = vsyncadd [#allocation6], %s24
      %s26 = sshll.u32 [#allocation5], 4
      %s27 = int_to_ptr.vmem [resolvable:$true] %s26
      %32 = dma.hbm_to_vmem [thread:$0]  %s1, 7168, %s27, [#allocation6], 64, 64, 4
    $region9: #{network_forward.1} parent=1 // pred_fallthru
      _
    // Predicated region
    $region10: #{network_forward.1} parent=1 // pred_check
      _
    $region11: #{network_forward.1} parent=1 // pred_check_branch
      %34 = sbr.rel (0) target = $region13
    $region12: #{network_forward.1} parent=1 // pred_region
      _
    $region13: #{network_forward.1} parent=1 // pred_fallthru
      _
    // Predicated region
    $region14: #{network_forward.1} parent=1 // pred_check
      _
    $region15: #{network_forward.1} parent=1 // pred_check_branch
      %36 = sbr.rel (0) target = $region17
    $region16: #{network_forward.1} parent=1 // pred_region
      %37 = dma.done [#allocation3], 128
    $region17: #{network_forward.1} parent=1 // pred_fallthru
      _
    // Predicated region
    $region18: #{network_forward.1} parent=1 // pred_check
      _
    $region19: #{network_forward.1} parent=1 // pred_check_branch
      %39 = sbr.rel (0) target = $region21
    $region20: #{network_forward.1} parent=1 // pred_region
      %40 = dma.done [#allocation6], 7168
    $region21: #{network_forward.1} parent=1 // pred_fallthru
      _
    %v42 = vld [vmem:[#allocation2] sm:$0xff]
    %v43 = vpack.c.bf16 %v42, %v42
    %v44 = vld [vmem:[#allocation5] sm:$0xf]
    %v45 = vld [vmem:[#allocation5 + $0x4] sm:$0xf]
    %v46 = vld [vmem:[#allocation5 + $0x8] sm:$0xf]
    %v47 = vld [vmem:[#allocation5 + $0xc] sm:$0xf]
    %v48 = vld [vmem:[%s2] sm:$0x1]
    %v50 = vlaneseq
    %v51 = vshrl.u32 %v50, 7
    %v52 = vsub.s32 0, %v51
    %v53 = vrot.slane %v48, %v52
    %v59 = vunpack.c.l.b16 %v44
    %v60 = vunpack.c.l.b16 %v45
    %v61 = vunpack.c.l.b16 %v46
    %v62 = vunpack.c.l.b16 %v47
    %v63 = vpack.c.b16 %v60, %v59
    %v64 = vpack.c.b16 %v62, %v61
    %vm67 = vcmask 261120
    %v69 = vsel %vm67, %v43, 0
    %71 = vmatprep.subr.bf16.mxu0 0
    %72 = vmatpush1.bf16.msra.mxu0 %v63
    %73 = vmatprep.subr.bf16.mxu0 0
    %74 = vmatpush1.bf16.msra.mxu0 %v64
    %75 = vmatprep.subr.bf16.mxu0 0
    %76 = vmatpush1.bf16.msra.mxu0 0
    %77 = vmatprep.subr.bf16.mxu0 0
    %78 = vmatpush1.bf16.msra.mxu0 0
    %79 = vmatprep.subr.bf16.mxu0 0
    %80 = vmatpush1.bf16.msra.mxu0 0
    %81 = vmatprep.subr.bf16.mxu0 0
    %82 = vmatpush1.bf16.msra.mxu0 0
    %83 = vmatprep.subr.bf16.mxu0 0
    %84 = vmatpush1.bf16.msra.mxu0 0
    %85 = vmatprep.subr.bf16.mxu0 0
    %86 = vmatpush1.bf16.msra.mxu0 0
    %87 = vmatprep.subr.bf16.mxu0 0
    %88 = vmatpush1.bf16.msra.mxu0 0
    %89 = vmatprep.subr.bf16.mxu0 0
    %90 = vmatpush1.bf16.msra.mxu0 0
    %91 = vmatprep.subr.bf16.mxu0 0
    %92 = vmatpush1.bf16.msra.mxu0 0
    %93 = vmatprep.subr.bf16.mxu0 0
    %94 = vmatpush1.bf16.msra.mxu0 0
    %95 = vmatprep.subr.bf16.mxu0 0
    %96 = vmatpush1.bf16.msra.mxu0 0
    %97 = vmatprep.subr.bf16.mxu0 0
    %98 = vmatpush1.bf16.msra.mxu0 0
    %99 = vmatprep.subr.bf16.mxu0 0
    %100 = vmatpush1.bf16.msra.mxu0 0
    %101 = vmatprep.subr.bf16.mxu0 0
    %102 = vmatpush1.bf16.msra.mxu0 0
    %103 = vmatprep.mubr.bf16.mxu0 0
    %104 = vmatmul.mubr.bf16.gmra.mrb[0].mxu0 %v69
    %v105 = vpop.f32.mrb[0].mxu0
    %v106 = vadd.f32 %v53, %v105
    %v107 = vpop.f32.mrb[0].mxu0
    %v108 = vpop.f32.mrb[0].mxu0
    %v109 = vpop.f32.mrb[0].mxu0
    %110 = vdwg.mxu0
    %v111 = vmax.f32 %v106, 0.0
    %v112 = vpack.c.bf16 %v111, %v111
    %s113 = scalar_lea.vmem [#allocation5], 64
    %v114 = vld [vmem:[%s113] sm:$0xf]
    %v115 = vld [vmem:[%s113 + $0x4] sm:$0xf]
    %v116 = vld [vmem:[%s113 + $0x8] sm:$0xf]
    %v117 = vld [vmem:[%s113 + $0xc] sm:$0xf]
    %v118 = vld [vmem:[%s113 + $0x10] sm:$0xf]
    %v119 = vld [vmem:[%s113 + $0x14] sm:$0xf]
    %v120 = vld [vmem:[%s113 + $0x18] sm:$0xf]
    %v121 = vld [vmem:[%s113 + $0x1c] sm:$0xf]
    %v122 = vld [vmem:[%s113 + $0x20] sm:$0xf]
    %v123 = vld [vmem:[%s113 + $0x24] sm:$0xf]
    %v124 = vld [vmem:[%s113 + $0x28] sm:$0xf]
    %v125 = vld [vmem:[%s113 + $0x2c] sm:$0xf]
    %v126 = vld [vmem:[%s113 + $0x30] sm:$0xf]
    %v127 = vld [vmem:[%s113 + $0x34] sm:$0xf]
    %v128 = vld [vmem:[%s113 + $0x38] sm:$0xf]
    %v129 = vld [vmem:[%s113 + $0x3c] sm:$0xf]
    %s130 = scalar_lea.vmem %s2, 1
    %v131 = vld [vmem:[%s130] sm:$0x1]
    %v133 = vlaneseq
    %v134 = vshrl.u32 %v133, 7
    %v135 = vsub.s32 0, %v134
    %v136 = vrot.slane %v131, %v135
    %v154 = vunpack.c.l.b16 %v114
    %v155 = vunpack.c.l.b16 %v115
    %v156 = vunpack.c.l.b16 %v116
    %v157 = vunpack.c.l.b16 %v117
    %v158 = vunpack.c.l.b16 %v118
    %v159 = vunpack.c.l.b16 %v119
    %v160 = vunpack.c.l.b16 %v120
    %v161 = vunpack.c.l.b16 %v121
    %v162 = vunpack.c.l.b16 %v122
    %v163 = vunpack.c.l.b16 %v123
    %v164 = vunpack.c.l.b16 %v124
    %v165 = vunpack.c.l.b16 %v125
    %v166 = vunpack.c.l.b16 %v126
    %v167 = vunpack.c.l.b16 %v127
    %v168 = vunpack.c.l.b16 %v128
    %v169 = vunpack.c.l.b16 %v129
    %v170 = vpack.c.b16 %v155, %v154
    %v171 = vpack.c.b16 %v157, %v156
    %v172 = vpack.c.b16 %v159, %v158
    %v173 = vpack.c.b16 %v161, %v160
    %v174 = vpack.c.b16 %v163, %v162
    %v175 = vpack.c.b16 %v165, %v164
    %v176 = vpack.c.b16 %v167, %v166
    %v177 = vpack.c.b16 %v169, %v168
    %186 = vmatprep.subr.bf16.mxu0 0
    %187 = vmatpush1.bf16.msra.mxu0 %v170
    %188 = vmatprep.subr.bf16.mxu0 0
    %189 = vmatpush1.bf16.msra.mxu0 %v171
    %190 = vmatprep.subr.bf16.mxu0 0
    %191 = vmatpush1.bf16.msra.mxu0 %v172
    %192 = vmatprep.subr.bf16.mxu0 0
    %193 = vmatpush1.bf16.msra.mxu0 %v173
    %194 = vmatprep.subr.bf16.mxu0 0
    %195 = vmatpush1.bf16.msra.mxu0 %v174
    %196 = vmatprep.subr.bf16.mxu0 0
    %197 = vmatpush1.bf16.msra.mxu0 %v175
    %198 = vmatprep.subr.bf16.mxu0 0
    %199 = vmatpush1.bf16.msra.mxu0 %v176
    %200 = vmatprep.subr.bf16.mxu0 0
    %201 = vmatpush1.bf16.msra.mxu0 %v177
    %202 = vmatprep.subr.bf16.mxu0 0
    %203 = vmatpush1.bf16.msra.mxu0 0
    %204 = vmatprep.subr.bf16.mxu0 0
    %205 = vmatpush1.bf16.msra.mxu0 0
    %206 = vmatprep.subr.bf16.mxu0 0
    %207 = vmatpush1.bf16.msra.mxu0 0
    %208 = vmatprep.subr.bf16.mxu0 0
    %209 = vmatpush1.bf16.msra.mxu0 0
    %210 = vmatprep.subr.bf16.mxu0 0
    %211 = vmatpush1.bf16.msra.mxu0 0
    %212 = vmatprep.subr.bf16.mxu0 0
    %213 = vmatpush1.bf16.msra.mxu0 0
    %214 = vmatprep.subr.bf16.mxu0 0
    %215 = vmatpush1.bf16.msra.mxu0 0
    %216 = vmatprep.subr.bf16.mxu0 0
    %217 = vmatpush1.bf16.msra.mxu0 0
    %218 = vmatprep.mubr.bf16.mxu0 0
    %219 = vmatmul.mubr.bf16.gmra.mrb[0].mxu0 %v112
    %v220 = vpop.f32.mrb[0].mxu0
    %v221 = vadd.f32 %v136, %v220
    %v222 = vpop.f32.mrb[0].mxu0
    %v223 = vpop.f32.mrb[0].mxu0
    %v224 = vpop.f32.mrb[0].mxu0
    %225 = vdwg.mxu0
    %v226 = vmax.f32 %v221, 0.0
    %v227 = vpack.c.bf16 %v226, %v226
    %s228 = scalar_lea.vmem [#allocation5], 128
    %v229 = vld [vmem:[%s228] sm:$0xf]
    %v230 = vld [vmem:[%s228 + $0x4] sm:$0xf]
    %v231 = vld [vmem:[%s228 + $0x8] sm:$0xf]
    %v232 = vld [vmem:[%s228 + $0xc] sm:$0xf]
    %v233 = vld [vmem:[%s228 + $0x10] sm:$0xf]
    %v234 = vld [vmem:[%s228 + $0x14] sm:$0xf]
    %v235 = vld [vmem:[%s228 + $0x18] sm:$0xf]
    %v236 = vld [vmem:[%s228 + $0x1c] sm:$0xf]
    %v237 = vld [vmem:[%s228 + $0x20] sm:$0xf]
    %v238 = vld [vmem:[%s228 + $0x24] sm:$0xf]
    %v239 = vld [vmem:[%s228 + $0x28] sm:$0xf]
    %v240 = vld [vmem:[%s228 + $0x2c] sm:$0xf]
    %v241 = vld [vmem:[%s228 + $0x30] sm:$0xf]
    %v242 = vld [vmem:[%s228 + $0x34] sm:$0xf]
    %v243 = vld [vmem:[%s228 + $0x38] sm:$0xf]
    %v244 = vld [vmem:[%s228 + $0x3c] sm:$0xf]
    %s245 = scalar_lea.vmem %s2, 2
    %v246 = vld [vmem:[%s245] sm:$0x1]
    %v248 = vlaneseq
    %v249 = vshrl.u32 %v248, 7
    %v250 = vsub.s32 0, %v249
    %v251 = vrot.slane %v246, %v250
    %v269 = vunpack.c.l.b16 %v229
    %v270 = vunpack.c.l.b16 %v230
    %v271 = vunpack.c.l.b16 %v231
    %v272 = vunpack.c.l.b16 %v232
    %v273 = vunpack.c.l.b16 %v233
    %v274 = vunpack.c.l.b16 %v234
    %v275 = vunpack.c.l.b16 %v235
    %v276 = vunpack.c.l.b16 %v236
    %v277 = vunpack.c.l.b16 %v237
    %v278 = vunpack.c.l.b16 %v238
    %v279 = vunpack.c.l.b16 %v239
    %v280 = vunpack.c.l.b16 %v240
    %v281 = vunpack.c.l.b16 %v241
    %v282 = vunpack.c.l.b16 %v242
    %v283 = vunpack.c.l.b16 %v243
    %v284 = vunpack.c.l.b16 %v244
    %v285 = vpack.c.b16 %v270, %v269
    %v286 = vpack.c.b16 %v272, %v271
    %v287 = vpack.c.b16 %v274, %v273
    %v288 = vpack.c.b16 %v276, %v275
    %v289 = vpack.c.b16 %v278, %v277
    %v290 = vpack.c.b16 %v280, %v279
    %v291 = vpack.c.b16 %v282, %v281
    %v292 = vpack.c.b16 %v284, %v283
    %301 = vmatprep.subr.bf16.mxu0 0
    %302 = vmatpush1.bf16.msra.mxu0 %v285
    %303 = vmatprep.subr.bf16.mxu0 0
    %304 = vmatpush1.bf16.msra.mxu0 %v286
    %305 = vmatprep.subr.bf16.mxu0 0
    %306 = vmatpush1.bf16.msra.mxu0 %v287
    %307 = vmatprep.subr.bf16.mxu0 0
    %308 = vmatpush1.bf16.msra.mxu0 %v288
    %309 = vmatprep.subr.bf16.mxu0 0
    %310 = vmatpush1.bf16.msra.mxu0 %v289
    %311 = vmatprep.subr.bf16.mxu0 0
    %312 = vmatpush1.bf16.msra.mxu0 %v290
    %313 = vmatprep.subr.bf16.mxu0 0
    %314 = vmatpush1.bf16.msra.mxu0 %v291
    %315 = vmatprep.subr.bf16.mxu0 0
    %316 = vmatpush1.bf16.msra.mxu0 %v292
    %317 = vmatprep.subr.bf16.mxu0 0
    %318 = vmatpush1.bf16.msra.mxu0 0
    %319 = vmatprep.subr.bf16.mxu0 0
    %320 = vmatpush1.bf16.msra.mxu0 0
    %321 = vmatprep.subr.bf16.mxu0 0
    %322 = vmatpush1.bf16.msra.mxu0 0
    %323 = vmatprep.subr.bf16.mxu0 0
    %324 = vmatpush1.bf16.msra.mxu0 0
    %325 = vmatprep.subr.bf16.mxu0 0
    %326 = vmatpush1.bf16.msra.mxu0 0
    %327 = vmatprep.subr.bf16.mxu0 0
    %328 = vmatpush1.bf16.msra.mxu0 0
    %329 = vmatprep.subr.bf16.mxu0 0
    %330 = vmatpush1.bf16.msra.mxu0 0
    %331 = vmatprep.subr.bf16.mxu0 0
    %332 = vmatpush1.bf16.msra.mxu0 0
    %333 = vmatprep.mubr.bf16.mxu0 0
    %334 = vmatmul.mubr.bf16.gmra.mrb[0].mxu0 %v227
    %v335 = vpop.f32.mrb[0].mxu0
    %v336 = vadd.f32 %v251, %v335
    %v337 = vpop.f32.mrb[0].mxu0
    %v338 = vpop.f32.mrb[0].mxu0
    %v339 = vpop.f32.mrb[0].mxu0
    %340 = vdwg.mxu0
    %v341 = vmax.f32 %v336, 0.0
    %v342 = vpack.c.bf16 %v341, %v341
    %s343 = scalar_lea.vmem [#allocation5], 192
    %v344 = vld [vmem:[%s343] sm:$0xf]
    %v345 = vld [vmem:[%s343 + $0x4] sm:$0xf]
    %v346 = vld [vmem:[%s343 + $0x8] sm:$0xf]
    %v347 = vld [vmem:[%s343 + $0xc] sm:$0xf]
    %v348 = vld [vmem:[%s343 + $0x10] sm:$0xf]
    %v349 = vld [vmem:[%s343 + $0x14] sm:$0xf]
    %v350 = vld [vmem:[%s343 + $0x18] sm:$0xf]
    %v351 = vld [vmem:[%s343 + $0x1c] sm:$0xf]
    %v352 = vld [vmem:[%s343 + $0x20] sm:$0xf]
    %v353 = vld [vmem:[%s343 + $0x24] sm:$0xf]
    %v354 = vld [vmem:[%s343 + $0x28] sm:$0xf]
    %v355 = vld [vmem:[%s343 + $0x2c] sm:$0xf]
    %v356 = vld [vmem:[%s343 + $0x30] sm:$0xf]
    %v357 = vld [vmem:[%s343 + $0x34] sm:$0xf]
    %v358 = vld [vmem:[%s343 + $0x38] sm:$0xf]
    %v359 = vld [vmem:[%s343 + $0x3c] sm:$0xf]
    %s360 = scalar_lea.vmem %s2, 3
    %v361 = vld [vmem:[%s360] sm:$0x1]
    %v363 = vlaneseq
    %v364 = vshrl.u32 %v363, 7
    %v365 = vsub.s32 0, %v364
    %v366 = vrot.slane %v361, %v365
    %v384 = vunpack.c.l.b16 %v344
    %v385 = vunpack.c.l.b16 %v345
    %v386 = vunpack.c.l.b16 %v346
    %v387 = vunpack.c.l.b16 %v347
    %v388 = vunpack.c.l.b16 %v348
    %v389 = vunpack.c.l.b16 %v349
    %v390 = vunpack.c.l.b16 %v350
    %v391 = vunpack.c.l.b16 %v351
    %v392 = vunpack.c.l.b16 %v352
    %v393 = vunpack.c.l.b16 %v353
    %v394 = vunpack.c.l.b16 %v354
    %v395 = vunpack.c.l.b16 %v355
    %v396 = vunpack.c.l.b16 %v356
    %v397 = vunpack.c.l.b16 %v357
    %v398 = vunpack.c.l.b16 %v358
    %v399 = vunpack.c.l.b16 %v359
    %v400 = vpack.c.b16 %v385, %v384
    %v401 = vpack.c.b16 %v387, %v386
    %v402 = vpack.c.b16 %v389, %v388
    %v403 = vpack.c.b16 %v391, %v390
    %v404 = vpack.c.b16 %v393, %v392
    %v405 = vpack.c.b16 %v395, %v394
    %v406 = vpack.c.b16 %v397, %v396
    %v407 = vpack.c.b16 %v399, %v398
    %416 = vmatprep.subr.bf16.mxu0 0
    %417 = vmatpush1.bf16.msra.mxu0 %v400
    %418 = vmatprep.subr.bf16.mxu0 0
    %419 = vmatpush1.bf16.msra.mxu0 %v401
    %420 = vmatprep.subr.bf16.mxu0 0
    %421 = vmatpush1.bf16.msra.mxu0 %v402
    %422 = vmatprep.subr.bf16.mxu0 0
    %423 = vmatpush1.bf16.msra.mxu0 %v403
    %424 = vmatprep.subr.bf16.mxu0 0
    %425 = vmatpush1.bf16.msra.mxu0 %v404
    %426 = vmatprep.subr.bf16.mxu0 0
    %427 = vmatpush1.bf16.msra.mxu0 %v405
    %428 = vmatprep.subr.bf16.mxu0 0
    %429 = vmatpush1.bf16.msra.mxu0 %v406
    %430 = vmatprep.subr.bf16.mxu0 0
    %431 = vmatpush1.bf16.msra.mxu0 %v407
    %432 = vmatprep.subr.bf16.mxu0 0
    %433 = vmatpush1.bf16.msra.mxu0 0
    %434 = vmatprep.subr.bf16.mxu0 0
    %435 = vmatpush1.bf16.msra.mxu0 0
    %436 = vmatprep.subr.bf16.mxu0 0
    %437 = vmatpush1.bf16.msra.mxu0 0
    %438 = vmatprep.subr.bf16.mxu0 0
    %439 = vmatpush1.bf16.msra.mxu0 0
    %440 = vmatprep.subr.bf16.mxu0 0
    %441 = vmatpush1.bf16.msra.mxu0 0
    %442 = vmatprep.subr.bf16.mxu0 0
    %443 = vmatpush1.bf16.msra.mxu0 0
    %444 = vmatprep.subr.bf16.mxu0 0
    %445 = vmatpush1.bf16.msra.mxu0 0
    %446 = vmatprep.subr.bf16.mxu0 0
    %447 = vmatpush1.bf16.msra.mxu0 0
    %448 = vmatprep.mubr.bf16.mxu0 0
    %449 = vmatmul.mubr.bf16.gmra.mrb[0].mxu0 %v342
    %v450 = vpop.f32.mrb[0].mxu0
    %v451 = vadd.f32 %v366, %v450
    %v452 = vpop.f32.mrb[0].mxu0
    %v453 = vpop.f32.mrb[0].mxu0
    %v454 = vpop.f32.mrb[0].mxu0
    %455 = vdwg.mxu0
    %v456 = vmax.f32 %v451, 0.0
    %v457 = vpack.c.bf16 %v456, %v456
    %s458 = scalar_lea.vmem [#allocation5], 256
    %v459 = vld [vmem:[%s458] sm:$0xf]
    %v460 = vld [vmem:[%s458 + $0x4] sm:$0xf]
    %v461 = vld [vmem:[%s458 + $0x8] sm:$0xf]
    %v462 = vld [vmem:[%s458 + $0xc] sm:$0xf]
    %v463 = vld [vmem:[%s458 + $0x10] sm:$0xf]
    %v464 = vld [vmem:[%s458 + $0x14] sm:$0xf]
    %v465 = vld [vmem:[%s458 + $0x18] sm:$0xf]
    %v466 = vld [vmem:[%s458 + $0x1c] sm:$0xf]
    %v467 = vld [vmem:[%s458 + $0x20] sm:$0xf]
    %v468 = vld [vmem:[%s458 + $0x24] sm:$0xf]
    %v469 = vld [vmem:[%s458 + $0x28] sm:$0xf]
    %v470 = vld [vmem:[%s458 + $0x2c] sm:$0xf]
    %v471 = vld [vmem:[%s458 + $0x30] sm:$0xf]
    %v472 = vld [vmem:[%s458 + $0x34] sm:$0xf]
    %v473 = vld [vmem:[%s458 + $0x38] sm:$0xf]
    %v474 = vld [vmem:[%s458 + $0x3c] sm:$0xf]
    %s475 = scalar_lea.vmem %s2, 4
    %v476 = vld [vmem:[%s475] sm:$0x1]
    %v478 = vlaneseq
    %v479 = vshrl.u32 %v478, 7
    %v480 = vsub.s32 0, %v479
    %v481 = vrot.slane %v476, %v480
    %v499 = vunpack.c.l.b16 %v459
    %v500 = vunpack.c.l.b16 %v460
    %v501 = vunpack.c.l.b16 %v461
    %v502 = vunpack.c.l.b16 %v462
    %v503 = vunpack.c.l.b16 %v463
    %v504 = vunpack.c.l.b16 %v464
    %v505 = vunpack.c.l.b16 %v465
    %v506 = vunpack.c.l.b16 %v466
    %v507 = vunpack.c.l.b16 %v467
    %v508 = vunpack.c.l.b16 %v468
    %v509 = vunpack.c.l.b16 %v469
    %v510 = vunpack.c.l.b16 %v470
    %v511 = vunpack.c.l.b16 %v471
    %v512 = vunpack.c.l.b16 %v472
    %v513 = vunpack.c.l.b16 %v473
    %v514 = vunpack.c.l.b16 %v474
    %v515 = vpack.c.b16 %v500, %v499
    %v516 = vpack.c.b16 %v502, %v501
    %v517 = vpack.c.b16 %v504, %v503
    %v518 = vpack.c.b16 %v506, %v505
    %v519 = vpack.c.b16 %v508, %v507
    %v520 = vpack.c.b16 %v510, %v509
    %v521 = vpack.c.b16 %v512, %v511
    %v522 = vpack.c.b16 %v514, %v513
    %531 = vmatprep.subr.bf16.mxu0 0
    %532 = vmatpush1.bf16.msra.mxu0 %v515
    %533 = vmatprep.subr.bf16.mxu0 0
    %534 = vmatpush1.bf16.msra.mxu0 %v516
    %535 = vmatprep.subr.bf16.mxu0 0
    %536 = vmatpush1.bf16.msra.mxu0 %v517
    %537 = vmatprep.subr.bf16.mxu0 0
    %538 = vmatpush1.bf16.msra.mxu0 %v518
    %539 = vmatprep.subr.bf16.mxu0 0
    %540 = vmatpush1.bf16.msra.mxu0 %v519
    %541 = vmatprep.subr.bf16.mxu0 0
    %542 = vmatpush1.bf16.msra.mxu0 %v520
    %543 = vmatprep.subr.bf16.mxu0 0
    %544 = vmatpush1.bf16.msra.mxu0 %v521
    %545 = vmatprep.subr.bf16.mxu0 0
    %546 = vmatpush1.bf16.msra.mxu0 %v522
    %547 = vmatprep.subr.bf16.mxu0 0
    %548 = vmatpush1.bf16.msra.mxu0 0
    %549 = vmatprep.subr.bf16.mxu0 0
    %550 = vmatpush1.bf16.msra.mxu0 0
    %551 = vmatprep.subr.bf16.mxu0 0
    %552 = vmatpush1.bf16.msra.mxu0 0
    %553 = vmatprep.subr.bf16.mxu0 0
    %554 = vmatpush1.bf16.msra.mxu0 0
    %555 = vmatprep.subr.bf16.mxu0 0
    %556 = vmatpush1.bf16.msra.mxu0 0
    %557 = vmatprep.subr.bf16.mxu0 0
    %558 = vmatpush1.bf16.msra.mxu0 0
    %559 = vmatprep.subr.bf16.mxu0 0
    %560 = vmatpush1.bf16.msra.mxu0 0
    %561 = vmatprep.subr.bf16.mxu0 0
    %562 = vmatpush1.bf16.msra.mxu0 0
    %563 = vmatprep.mubr.bf16.mxu0 0
    %564 = vmatmul.mubr.bf16.gmra.mrb[0].mxu0 %v457
    %v565 = vpop.f32.mrb[0].mxu0
    %v566 = vadd.f32 %v481, %v565
    %v567 = vpop.f32.mrb[0].mxu0
    %v568 = vpop.f32.mrb[0].mxu0
    %v569 = vpop.f32.mrb[0].mxu0
    %570 = vdwg.mxu0
    %v571 = vmax.f32 %v566, 0.0
    %v572 = vpack.c.bf16 %v571, %v571
    %s573 = scalar_lea.vmem [#allocation5], 320
    %v574 = vld [vmem:[%s573] sm:$0xf]
    %v575 = vld [vmem:[%s573 + $0x4] sm:$0xf]
    %v576 = vld [vmem:[%s573 + $0x8] sm:$0xf]
    %v577 = vld [vmem:[%s573 + $0xc] sm:$0xf]
    %v578 = vld [vmem:[%s573 + $0x10] sm:$0xf]
    %v579 = vld [vmem:[%s573 + $0x14] sm:$0xf]
    %v580 = vld [vmem:[%s573 + $0x18] sm:$0xf]
    %v581 = vld [vmem:[%s573 + $0x1c] sm:$0xf]
    %v582 = vld [vmem:[%s573 + $0x20] sm:$0xf]
    %v583 = vld [vmem:[%s573 + $0x24] sm:$0xf]
    %v584 = vld [vmem:[%s573 + $0x28] sm:$0xf]
    %v585 = vld [vmem:[%s573 + $0x2c] sm:$0xf]
    %v586 = vld [vmem:[%s573 + $0x30] sm:$0xf]
    %v587 = vld [vmem:[%s573 + $0x34] sm:$0xf]
    %v588 = vld [vmem:[%s573 + $0x38] sm:$0xf]
    %v589 = vld [vmem:[%s573 + $0x3c] sm:$0xf]
    %s590 = scalar_lea.vmem %s2, 5
    %v591 = vld [vmem:[%s590] sm:$0x1]
    %v593 = vlaneseq
    %v594 = vshrl.u32 %v593, 7
    %v595 = vsub.s32 0, %v594
    %v596 = vrot.slane %v591, %v595
    %v614 = vunpack.c.l.b16 %v574
    %v615 = vunpack.c.l.b16 %v575
    %v616 = vunpack.c.l.b16 %v576
    %v617 = vunpack.c.l.b16 %v577
    %v618 = vunpack.c.l.b16 %v578
    %v619 = vunpack.c.l.b16 %v579
    %v620 = vunpack.c.l.b16 %v580
    %v621 = vunpack.c.l.b16 %v581
    %v622 = vunpack.c.l.b16 %v582
    %v623 = vunpack.c.l.b16 %v583
    %v624 = vunpack.c.l.b16 %v584
    %v625 = vunpack.c.l.b16 %v585
    %v626 = vunpack.c.l.b16 %v586
    %v627 = vunpack.c.l.b16 %v587
    %v628 = vunpack.c.l.b16 %v588
    %v629 = vunpack.c.l.b16 %v589
    %v630 = vpack.c.b16 %v615, %v614
    %v631 = vpack.c.b16 %v617, %v616
    %v632 = vpack.c.b16 %v619, %v618
    %v633 = vpack.c.b16 %v621, %v620
    %v634 = vpack.c.b16 %v623, %v622
    %v635 = vpack.c.b16 %v625, %v624
    %v636 = vpack.c.b16 %v627, %v626
    %v637 = vpack.c.b16 %v629, %v628
    %646 = vmatprep.subr.bf16.mxu0 0
    %647 = vmatpush1.bf16.msra.mxu0 %v630
    %648 = vmatprep.subr.bf16.mxu0 0
    %649 = vmatpush1.bf16.msra.mxu0 %v631
    %650 = vmatprep.subr.bf16.mxu0 0
    %651 = vmatpush1.bf16.msra.mxu0 %v632
    %652 = vmatprep.subr.bf16.mxu0 0
    %653 = vmatpush1.bf16.msra.mxu0 %v633
    %654 = vmatprep.subr.bf16.mxu0 0
    %655 = vmatpush1.bf16.msra.mxu0 %v634
    %656 = vmatprep.subr.bf16.mxu0 0
    %657 = vmatpush1.bf16.msra.mxu0 %v635
    %658 = vmatprep.subr.bf16.mxu0 0
    %659 = vmatpush1.bf16.msra.mxu0 %v636
    %660 = vmatprep.subr.bf16.mxu0 0
    %661 = vmatpush1.bf16.msra.mxu0 %v637
    %662 = vmatprep.subr.bf16.mxu0 0
    %663 = vmatpush1.bf16.msra.mxu0 0
    %664 = vmatprep.subr.bf16.mxu0 0
    %665 = vmatpush1.bf16.msra.mxu0 0
    %666 = vmatprep.subr.bf16.mxu0 0
    %667 = vmatpush1.bf16.msra.mxu0 0
    %668 = vmatprep.subr.bf16.mxu0 0
    %669 = vmatpush1.bf16.msra.mxu0 0
    %670 = vmatprep.subr.bf16.mxu0 0
    %671 = vmatpush1.bf16.msra.mxu0 0
    %672 = vmatprep.subr.bf16.mxu0 0
    %673 = vmatpush1.bf16.msra.mxu0 0
    %674 = vmatprep.subr.bf16.mxu0 0
    %675 = vmatpush1.bf16.msra.mxu0 0
    %676 = vmatprep.subr.bf16.mxu0 0
    %677 = vmatpush1.bf16.msra.mxu0 0
    %678 = vmatprep.mubr.bf16.mxu0 0
    %679 = vmatmul.mubr.bf16.gmra.mrb[0].mxu0 %v572
    %v680 = vpop.f32.mrb[0].mxu0
    %v681 = vadd.f32 %v596, %v680
    %v682 = vpop.f32.mrb[0].mxu0
    %v683 = vpop.f32.mrb[0].mxu0
    %v684 = vpop.f32.mrb[0].mxu0
    %685 = vdwg.mxu0
    %v686 = vmax.f32 %v681, 0.0
    %v687 = vpack.c.bf16 %v686, %v686
    %s688 = scalar_lea.vmem [#allocation5], 384
    %v689 = vld [vmem:[%s688] sm:$0xf]
    %v690 = vld [vmem:[%s688 + $0x4] sm:$0xf]
    %v691 = vld [vmem:[%s688 + $0x8] sm:$0xf]
    %v692 = vld [vmem:[%s688 + $0xc] sm:$0xf]
    %v693 = vld [vmem:[%s688 + $0x10] sm:$0xf]
    %v694 = vld [vmem:[%s688 + $0x14] sm:$0xf]
    %v695 = vld [vmem:[%s688 + $0x18] sm:$0xf]
    %v696 = vld [vmem:[%s688 + $0x1c] sm:$0xf]
    %v697 = vld [vmem:[%s688 + $0x20] sm:$0xf]
    %v698 = vld [vmem:[%s688 + $0x24] sm:$0xf]
    %v699 = vld [vmem:[%s688 + $0x28] sm:$0xf]
    %v700 = vld [vmem:[%s688 + $0x2c] sm:$0xf]
    %v701 = vld [vmem:[%s688 + $0x30] sm:$0xf]
    %v702 = vld [vmem:[%s688 + $0x34] sm:$0xf]
    %v703 = vld [vmem:[%s688 + $0x38] sm:$0xf]
    %v704 = vld [vmem:[%s688 + $0x3c] sm:$0xf]
    %s705 = scalar_lea.vmem %s2, 6
    %v706 = vld [vmem:[%s705] sm:$0x1]
    %v708 = vlaneseq
    %v709 = vshrl.u32 %v708, 7
    %v710 = vsub.s32 0, %v709
    %v711 = vrot.slane %v706, %v710
    %v729 = vunpack.c.l.b16 %v689
    %v730 = vunpack.c.l.b16 %v690
    %v731 = vunpack.c.l.b16 %v691
    %v732 = vunpack.c.l.b16 %v692
    %v733 = vunpack.c.l.b16 %v693
    %v734 = vunpack.c.l.b16 %v694
    %v735 = vunpack.c.l.b16 %v695
    %v736 = vunpack.c.l.b16 %v696
    %v737 = vunpack.c.l.b16 %v697
    %v738 = vunpack.c.l.b16 %v698
    %v739 = vunpack.c.l.b16 %v699
    %v740 = vunpack.c.l.b16 %v700
    %v741 = vunpack.c.l.b16 %v701
    %v742 = vunpack.c.l.b16 %v702
    %v743 = vunpack.c.l.b16 %v703
    %v744 = vunpack.c.l.b16 %v704
    %v745 = vpack.c.b16 %v730, %v729
    %v746 = vpack.c.b16 %v732, %v731
    %v747 = vpack.c.b16 %v734, %v733
    %v748 = vpack.c.b16 %v736, %v735
    %v749 = vpack.c.b16 %v738, %v737
    %v750 = vpack.c.b16 %v740, %v739
    %v751 = vpack.c.b16 %v742, %v741
    %v752 = vpack.c.b16 %v744, %v743
    %761 = vmatprep.subr.bf16.mxu0 0
    %762 = vmatpush1.bf16.msra.mxu0 %v745
    %763 = vmatprep.subr.bf16.mxu0 0
    %764 = vmatpush1.bf16.msra.mxu0 %v746
    %765 = vmatprep.subr.bf16.mxu0 0
    %766 = vmatpush1.bf16.msra.mxu0 %v747
    %767 = vmatprep.subr.bf16.mxu0 0
    %768 = vmatpush1.bf16.msra.mxu0 %v748
    %769 = vmatprep.subr.bf16.mxu0 0
    %770 = vmatpush1.bf16.msra.mxu0 %v749
    %771 = vmatprep.subr.bf16.mxu0 0
    %772 = vmatpush1.bf16.msra.mxu0 %v750
    %773 = vmatprep.subr.bf16.mxu0 0
    %774 = vmatpush1.bf16.msra.mxu0 %v751
    %775 = vmatprep.subr.bf16.mxu0 0
    %776 = vmatpush1.bf16.msra.mxu0 %v752
    %777 = vmatprep.subr.bf16.mxu0 0
    %778 = vmatpush1.bf16.msra.mxu0 0
    %779 = vmatprep.subr.bf16.mxu0 0
    %780 = vmatpush1.bf16.msra.mxu0 0
    %781 = vmatprep.subr.bf16.mxu0 0
    %782 = vmatpush1.bf16.msra.mxu0 0
    %783 = vmatprep.subr.bf16.mxu0 0
    %784 = vmatpush1.bf16.msra.mxu0 0
    %785 = vmatprep.subr.bf16.mxu0 0
    %786 = vmatpush1.bf16.msra.mxu0 0
    %787 = vmatprep.subr.bf16.mxu0 0
    %788 = vmatpush1.bf16.msra.mxu0 0
    %789 = vmatprep.subr.bf16.mxu0 0
    %790 = vmatpush1.bf16.msra.mxu0 0
    %791 = vmatprep.subr.bf16.mxu0 0
    %792 = vmatpush1.bf16.msra.mxu0 0
    %793 = vmatprep.mubr.bf16.mxu0 0
    %794 = vmatmul.mubr.bf16.gmra.mrb[0].mxu0 %v687
    %v795 = vpop.f32.mrb[0].mxu0
    %v796 = vadd.f32 %v711, %v795
    %v797 = vpop.f32.mrb[0].mxu0
    %v798 = vpop.f32.mrb[0].mxu0
    %v799 = vpop.f32.mrb[0].mxu0
    %800 = vdwg.mxu0
    %801 = vst [vmem:[#allocation7] sm:$0xff] %v796
    // Predicated region
    $region22: #{network_forward.1} parent=1 // pred_check
      _
    $region23: #{network_forward.1} parent=1 // pred_check_branch
      %803 = sbr.rel (0) target = $region25
    $region24: #{network_forward.1} parent=1 // pred_region
      %s805 = ssub.s32 128, 128
      %806 = vsyncadd [#allocation4], %s805
      %s808 = sshll.u32 [#allocation7], 4
      %s809 = int_to_ptr.vmem [resolvable:$true] %s808
      %811 = dma.vmem_to_hbm [thread:$0]  %s809, 128, %s3, [#allocation4]
    $region25: #{network_forward.1} parent=1 // pred_fallthru
      _
    // Predicated region
    $region26: #{network_forward.1} parent=1 // pred_check
      _
    $region27: #{network_forward.1} parent=1 // pred_check_branch
      %813 = sbr.rel (0) target = $region29
    $region28: #{network_forward.1} parent=1 // pred_region
      %814 = dma.done [#allocation4], 128
    $region29: #{network_forward.1} parent=1 // pred_fallthru
      _
    %815 = vsyncpa [#allocation3], 1
    %816 = vsyncpa [#allocation6], 1
    %817 = vsyncpa [#allocation4], 1

</llo_original>
